<compile_context>
chip_gen: v5e
topology: v5e:2x2
jax: 0.10.0
libtpu: 0.0.40
codegen_flags: <defaults>
</compile_context>

<pallas_src>
import functools
import numpy as np
import jax
import jax.numpy as jnp
from jax import lax
from jax.experimental import pallas as pl
from jax.experimental.pallas import tpu as pltpu


def _rcu_kernel(x_ref, w1_ref, b1_ref, w2_ref, b2_ref, cm_ref, o_ref, ext_ref, *, w):
    # x_ref:          (1, C, H*W) f32   NCHW-flat input block
    # w1_ref/w2_ref:  (C, 9*C)    bf16  tap-packed weights (out-ch x [tap, in-ch])
    # b1_ref/b2_ref:  (C, 1)      f32
    # cm_ref:         (3, H*W)    bf16  per-dx column-validity masks (0/1)
    # o_ref:          (1, C, H*W) f32   lane-dense channels-first output
    # ext_ref:        (C, H*W + 2*W + 2) bf16 scratch: zero-extended activation buffer
    _, c, hw = x_ref.shape
    x = x_ref[0]                                  # (C, HW) f32 -- exact identity operand
    cm = cm_ref[...]                              # (3, HW) bf16

    # Halo-only zeroing: the interior is fully overwritten below, so only the two small
    # end strips need clearing (re-done every grid step -> megacore safe).
    zstrip = jnp.zeros((c, w + 1), jnp.bfloat16)
    ext_ref[:, :w + 1] = zstrip
    ext_ref[:, w + 1 + hw:] = zstrip

    def taps():
        # Build the fused-K operand (9C, HW): tap (dy,dx) rows are the flat activation
        # shifted by (dy-1)*W + (dx-1) (zeros supplied by the extension strips), with the
        # per-dx column mask killing the within-row wrap of the flat layout.
        rows = []
        for dy in range(3):
            for dx in range(3):
                s = dy * w + dx                   # == (W+1) + (dy-1)*W + (dx-1) >= 0
                sl = ext_ref[:, s:s + hw]         # (C, HW) bf16, static lane-offset slice
                if dx != 1:                       # dx == 1 mask is all-ones -> skip mul
                    sl = sl * cm[dx:dx + 1, :]
                rows.append(sl)
        return jnp.concatenate(rows, axis=0)      # (9C, HW) bf16

    # ---- conv1: single MXU dot, K = 9*C, f32 accumulation ---------------------------
    ext_ref[:, w + 1:w + 1 + hw] = jnp.maximum(x, 0.0).astype(jnp.bfloat16)  # one cast
    acc1 = jnp.dot(w1_ref[...], taps(), preferred_element_type=jnp.float32)  # (C, HW)
    t = jnp.maximum(acc1 + b1_ref[...], 0.0)      # bias + ReLU #2, f32

    # ---- conv2: reuse the same extended buffer (strips still zero) ------------------
    ext_ref[:, w + 1:w + 1 + hw] = t.astype(jnp.bfloat16)                    # one cast
    acc2 = jnp.dot(w2_ref[...], taps(), preferred_element_type=jnp.float32)  # (C, HW)

    # bias + exact f32 identity residual; lane-dense channels-first store.
    o_ref[0] = acc2 + b2_ref[...] + x


def residual_conv_unit(x_nchw, w1_hwio, b1, w2_hwio, b2):
    """Fused ReLU -> conv3x3(same) -> ReLU -> conv3x3(same) -> +identity. NCHW in/out."""
    n, c, h, w = x_nchw.shape
    hw = h * w

    # Free layout glue only: NCHW -> (N, C, H*W) is a metadata reshape (no transpose,
    # no pad, no extra HBM pass; the halo is built inside the kernel in VMEM).
    x_flat = x_nchw.reshape(n, c, hw).astype(jnp.float32)

    def pack(w_hwio_):
        # (3,3,Cin,Cout) -> (Cout, 9*Cin), tap-major (tap = dy*3+dx) to match taps().
        return jnp.transpose(w_hwio_.reshape(9, c, c), (2, 0, 1)) \
                  .reshape(c, 9 * c).astype(jnp.bfloat16)

    w1p, w2p = pack(w1_hwio), pack(w2_hwio)
    b1m = b1.reshape(c, 1).astype(jnp.float32)
    b2m = b2.reshape(c, 1).astype(jnp.float32)

    # Per-dx column validity (dx=0 invalid at x=0, dx=2 invalid at x=W-1).
    col = np.arange(hw) % w
    cmask_np = np.stack([col >= 1, np.ones(hw, dtype=bool), col <= w - 2]).astype(np.float32)
    cmask = jnp.asarray(cmask_np, dtype=jnp.bfloat16)

    flops = 4 * n * hw * 9 * c * c                # two 3x3 convs, 2 flops per MAC
    bytes_accessed = (x_flat.size * 4 + (w1p.size + w2p.size) * 2
                      + (b1m.size + b2m.size) * 4 + cmask.size * 2 + n * c * hw * 4)

    kernel = functools.partial(_rcu_kernel, w=w)

    out_flat = pl.pallas_call(
        kernel,
        out_shape=jax.ShapeDtypeStruct((n, c, hw), jnp.float32),
        grid_spec=pltpu.PrefetchScalarGridSpec(
            num_scalar_prefetch=0,
            grid=(n,),
            in_specs=[
                pl.BlockSpec((1, c, hw), lambda i: (i, 0, 0)),     # x (NCHW-flat)
                pl.BlockSpec((c, 9 * c), lambda i: (0, 0)),        # packed w1
                pl.BlockSpec((c, 1), lambda i: (0, 0)),            # b1
                pl.BlockSpec((c, 9 * c), lambda i: (0, 0)),        # packed w2
                pl.BlockSpec((c, 1), lambda i: (0, 0)),            # b2
                pl.BlockSpec((3, hw), lambda i: (0, 0)),           # column masks
            ],
            out_specs=pl.BlockSpec((1, c, hw), lambda i: (i, 0, 0)),
            scratch_shapes=[pltpu.VMEM((c, hw + 2 * w + 2), jnp.bfloat16)],
        ),
        compiler_params=pltpu.CompilerParams(dimension_semantics=("parallel",)),
        cost_estimate=pl.CostEstimate(flops=flops, transcendentals=0,
                                      bytes_accessed=bytes_accessed),
    )(x_flat, w1p, b1m, w2p, b2m, cmask)

    # Free reshape back to NCHW.
    return out_flat.reshape(n, c, h, w)


class ResidualConvUnitPallas:
    """Pallas port of the PyTorch residualConvUnit module (kernel_size=3, 'same' convs)."""

    def __init__(self, channels, key, kernel_size=3):
        assert kernel_size == 3, "this port implements the default 3x3 case"
        k1, k2, k3, k4 = jax.random.split(key, 4)
        fan_in = channels * kernel_size * kernel_size
        bound = 1.0 / np.sqrt(fan_in)
        shape = (kernel_size, kernel_size, channels, channels)   # HWIO
        self.w1 = jax.random.uniform(k1, shape, jnp.float32, -bound, bound)
        self.b1 = jax.random.uniform(k2, (channels,), jnp.float32, -bound, bound)
        self.w2 = jax.random.uniform(k3, shape, jnp.float32, -bound, bound)
        self.b2 = jax.random.uniform(k4, (channels,), jnp.float32, -bound, bound)

    def __call__(self, x_nchw):
        return residual_conv_unit(x_nchw, self.w1, self.b1, self.w2, self.b2)


def _reference(x_nchw, w1_hwio, b1, w2_hwio, b2):
    """Pure-JAX reference with the same bf16-operand / f32-accumulate numerics."""
    dn = ('NCHW', 'HWIO', 'NCHW')
    x = x_nchw.astype(jnp.float32)
    t = jnp.maximum(x, 0.0)
    t = lax.conv_general_dilated(
        t.astype(jnp.bfloat16), w1_hwio.astype(jnp.bfloat16), (1, 1), 'SAME',
        dimension_numbers=dn, preferred_element_type=jnp.float32) + b1.reshape(1, -1, 1, 1)
    t = jnp.maximum(t, 0.0)
    t = lax.conv_general_dilated(
        t.astype(jnp.bfloat16), w2_hwio.astype(jnp.bfloat16), (1, 1), 'SAME',
        dimension_numbers=dn, preferred_element_type=jnp.float32) + b2.reshape(1, -1, 1, 1)
    return t + x


if __name__ == "__main__":
    key = jax.random.PRNGKey(0)
    k_mod, k_x = jax.random.split(key)

    N, C, H, W = 2, 8, 16, 16                 # NCHW; H*W = 256 -> lane-dense blocks
    x = jax.random.normal(k_x, (N, C, H, W), jnp.float32)

    module = ResidualConvUnitPallas(C, key=k_mod)

    fwd = jax.jit(module.__call__)
    out = jax.block_until_ready(fwd(x))

    ref = _reference(x, module.w1, module.b1, module.w2, module.b2)
    # Both paths use bf16 matmul operands with f32 accumulation; tolerance covers the
    # differing accumulation / rounding order between the fused in-kernel dot and XLA conv.
    np.testing.assert_allclose(np.asarray(out), np.asarray(ref), rtol=2e-2, atol=2e-2)
    assert out.shape == (N, C, H, W)

    print("KERNEL_OK")
</pallas_src>

<mosaic_0001>
module attributes {stable_mosaic.version = 11 : i64} {
  func.func @_rcu_kernel(%arg0: i32, %arg1: memref<1x8x256xf32, #tpu.memory_space<vmem>>, %arg2: memref<8x72xbf16, #tpu.memory_space<vmem>>, %arg3: memref<8x1xf32, #tpu.memory_space<vmem>>, %arg4: memref<8x72xbf16, #tpu.memory_space<vmem>>, %arg5: memref<8x1xf32, #tpu.memory_space<vmem>>, %arg6: memref<3x256xbf16, #tpu.memory_space<vmem>>, %arg7: memref<1x8x256xf32, #tpu.memory_space<vmem>>, %arg8: memref<8x290xbf16, #tpu.memory_space<vmem>>) attributes {dimension_semantics = [#tpu.dimension_semantics<parallel>], iteration_bounds = array<i64: 2>, scalar_prefetch = 0 : i64, scratch_operands = 1 : i64, tpu.core_type = #tpu.core_type<tc>, window_params = [{transform_indices = @transform_0, window_bounds = array<i64: 1, 8, 256>}, {pipeline_mode = #tpu.pipeline_mode<synchronous>, transform_indices = @transform_1, window_bounds = array<i64: 8, 72>}, {pipeline_mode = #tpu.pipeline_mode<synchronous>, transform_indices = @transform_2, window_bounds = array<i64: 8, 1>}, {pipeline_mode = #tpu.pipeline_mode<synchronous>, transform_indices = @transform_3, window_bounds = array<i64: 8, 72>}, {pipeline_mode = #tpu.pipeline_mode<synchronous>, transform_indices = @transform_4, window_bounds = array<i64: 8, 1>}, {pipeline_mode = #tpu.pipeline_mode<synchronous>, transform_indices = @transform_5, window_bounds = array<i64: 3, 256>}, {transform_indices = @transform_6, window_bounds = array<i64: 1, 8, 256>}]} {
    %c0 = arith.constant 0 : index
    %c0_0 = arith.constant 0 : index
    %c0_1 = arith.constant 0 : index
    %0 = vector.load %arg1[%c0, %c0_0, %c0_1] : memref<1x8x256xf32, #tpu.memory_space<vmem>>, vector<1x8x256xf32>
    %1 = vector.shape_cast %0 : vector<1x8x256xf32> to vector<8x256xf32>
    %c0_2 = arith.constant 0 : index
    %c0_3 = arith.constant 0 : index
    %2 = vector.load %arg6[%c0_2, %c0_3] : memref<3x256xbf16, #tpu.memory_space<vmem>>, vector<3x256xbf16>
    %cst = arith.constant 0.000000e+00 : bf16
    %3 = vector.broadcast %cst : bf16 to vector<8x17xbf16>
    %c0_4 = arith.constant 0 : index
    %c0_5 = arith.constant 0 : index
    %4 = vector.load %arg8[%c0_4, %c0_5] : memref<8x290xbf16, #tpu.memory_space<vmem>>, vector<8x17xbf16>
    tpu.vector_store %arg8[%c0_4, %c0_5], %3 {strides = array<i32>} : memref<8x290xbf16, #tpu.memory_space<vmem>>, vector<8x17xbf16>,
    %c0_6 = arith.constant 0 : index
    %c273 = arith.constant 273 : index
    %5 = vector.load %arg8[%c0_6, %c273] : memref<8x290xbf16, #tpu.memory_space<vmem>>, vector<8x17xbf16>
    tpu.vector_store %arg8[%c0_6, %c273], %3 {strides = array<i32>} : memref<8x290xbf16, #tpu.memory_space<vmem>>, vector<8x17xbf16>,
    %cst_7 = arith.constant 0.000000e+00 : f32
    %6 = vector.broadcast %cst_7 : f32 to vector<8x256xf32>
    %7 = arith.maximumf %1, %6 : vector<8x256xf32>
    %8 = arith.truncf %7 : vector<8x256xf32> to vector<8x256xbf16>
    %c0_8 = arith.constant 0 : index
    %c17 = arith.constant 17 : index
    %9 = vector.load %arg8[%c0_8, %c17] : memref<8x290xbf16, #tpu.memory_space<vmem>>, vector<8x256xbf16>
    tpu.vector_store %arg8[%c0_8, %c17], %8 {strides = array<i32>} : memref<8x290xbf16, #tpu.memory_space<vmem>>, vector<8x256xbf16>,
    %c0_9 = arith.constant 0 : index
    %c0_10 = arith.constant 0 : index
    %10 = vector.load %arg2[%c0_9, %c0_10] : memref<8x72xbf16, #tpu.memory_space<vmem>>, vector<8x72xbf16>
    %c0_11 = arith.constant 0 : index
    %c0_12 = arith.constant 0 : index
    %11 = vector.load %arg8[%c0_11, %c0_12] : memref<8x290xbf16, #tpu.memory_space<vmem>>, vector<8x256xbf16>
    %12 = vector.extract_strided_slice %2 {offsets = [0, 0], sizes = [1, 256], strides = [1, 1]} : vector<3x256xbf16> to vector<1x256xbf16>
    %13 = vector.broadcast %12 : vector<1x256xbf16> to vector<8x256xbf16>
    %14 = arith.mulf %11, %13 : vector<8x256xbf16>
    %c0_13 = arith.constant 0 : index
    %c1 = arith.constant 1 : index
    %15 = vector.load %arg8[%c0_13, %c1] : memref<8x290xbf16, #tpu.memory_space<vmem>>, vector<8x256xbf16>
    %c0_14 = arith.constant 0 : index
    %c2 = arith.constant 2 : index
    %16 = vector.load %arg8[%c0_14, %c2] : memref<8x290xbf16, #tpu.memory_space<vmem>>, vector<8x256xbf16>
    %17 = vector.extract_strided_slice %2 {offsets = [2, 0], sizes = [1, 256], strides = [1, 1]} : vector<3x256xbf16> to vector<1x256xbf16>
    %18 = vector.broadcast %17 : vector<1x256xbf16> to vector<8x256xbf16>
    %19 = arith.mulf %16, %18 : vector<8x256xbf16>
    %c0_15 = arith.constant 0 : index
    %c16 = arith.constant 16 : index
    %20 = vector.load %arg8[%c0_15, %c16] : memref<8x290xbf16, #tpu.memory_space<vmem>>, vector<8x256xbf16>
    %21 = vector.extract_strided_slice %2 {offsets = [0, 0], sizes = [1, 256], strides = [1, 1]} : vector<3x256xbf16> to vector<1x256xbf16>
    %22 = vector.broadcast %21 : vector<1x256xbf16> to vector<8x256xbf16>
    %23 = arith.mulf %20, %22 : vector<8x256xbf16>
    %c0_16 = arith.constant 0 : index
    %c17_17 = arith.constant 17 : index
    %24 = vector.load %arg8[%c0_16, %c17_17] : memref<8x290xbf16, #tpu.memory_space<vmem>>, vector<8x256xbf16>
    %c0_18 = arith.constant 0 : index
    %c18 = arith.constant 18 : index
    %25 = vector.load %arg8[%c0_18, %c18] : memref<8x290xbf16, #tpu.memory_space<vmem>>, vector<8x256xbf16>
    %26 = vector.extract_strided_slice %2 {offsets = [2, 0], sizes = [1, 256], strides = [1, 1]} : vector<3x256xbf16> to vector<1x256xbf16>
    %27 = vector.broadcast %26 : vector<1x256xbf16> to vector<8x256xbf16>
    %28 = arith.mulf %25, %27 : vector<8x256xbf16>
    %c0_19 = arith.constant 0 : index
    %c32 = arith.constant 32 : index
    %29 = vector.load %arg8[%c0_19, %c32] : memref<8x290xbf16, #tpu.memory_space<vmem>>, vector<8x256xbf16>
    %30 = vector.extract_strided_slice %2 {offsets = [0, 0], sizes = [1, 256], strides = [1, 1]} : vector<3x256xbf16> to vector<1x256xbf16>
    %31 = vector.broadcast %30 : vector<1x256xbf16> to vector<8x256xbf16>
    %32 = arith.mulf %29, %31 : vector<8x256xbf16>
    %c0_20 = arith.constant 0 : index
    %c33 = arith.constant 33 : index
    %33 = vector.load %arg8[%c0_20, %c33] : memref<8x290xbf16, #tpu.memory_space<vmem>>, vector<8x256xbf16>
    %c0_21 = arith.constant 0 : index
    %c34 = arith.constant 34 : index
    %34 = vector.load %arg8[%c0_21, %c34] : memref<8x290xbf16, #tpu.memory_space<vmem>>, vector<8x256xbf16>
    %35 = vector.extract_strided_slice %2 {offsets = [2, 0], sizes = [1, 256], strides = [1, 1]} : vector<3x256xbf16> to vector<1x256xbf16>
    %36 = vector.broadcast %35 : vector<1x256xbf16> to vector<8x256xbf16>
    %37 = arith.mulf %34, %36 : vector<8x256xbf16>
    %38 = tpu.concatenate %14, %15, %19, %23, %24, %28, %32, %33, %37 in 0 : vector<8x256xbf16>, vector<8x256xbf16>, vector<8x256xbf16>, vector<8x256xbf16>, vector<8x256xbf16>, vector<8x256xbf16>, vector<8x256xbf16>, vector<8x256xbf16>, vector<8x256xbf16> -> vector<72x256xbf16>
    %cst_22 = arith.constant dense<0.000000e+00> : vector<8x256xf32>
    %39 = tpu.matmul %10, %38, %cst_22 {dimension_numbers = #tpu.dot_dimension_numbers<[1], [0], [0], [1], [0, 0, 1, 1], [], []>} : vector<8x72xbf16>, vector<72x256xbf16>, vector<8x256xf32> -> vector<8x256xf32>
    %c0_23 = arith.constant 0 : index
    %c0_24 = arith.constant 0 : index
    %40 = vector.load %arg3[%c0_23, %c0_24] : memref<8x1xf32, #tpu.memory_space<vmem>>, vector<8x1xf32>
    %41 = vector.broadcast %40 : vector<8x1xf32> to vector<8x256xf32>
    %42 = arith.addf %39, %41 : vector<8x256xf32>
    %cst_25 = arith.constant 0.000000e+00 : f32
    %43 = vector.broadcast %cst_25 : f32 to vector<8x256xf32>
    %44 = arith.maximumf %42, %43 : vector<8x256xf32>
    %45 = arith.truncf %44 : vector<8x256xf32> to vector<8x256xbf16>
    %c0_26 = arith.constant 0 : index
    %c17_27 = arith.constant 17 : index
    %46 = vector.load %arg8[%c0_26, %c17_27] : memref<8x290xbf16, #tpu.memory_space<vmem>>, vector<8x256xbf16>
    tpu.vector_store %arg8[%c0_26, %c17_27], %45 {strides = array<i32>} : memref<8x290xbf16, #tpu.memory_space<vmem>>, vector<8x256xbf16>,
    %c0_28 = arith.constant 0 : index
    %c0_29 = arith.constant 0 : index
    %47 = vector.load %arg4[%c0_28, %c0_29] : memref<8x72xbf16, #tpu.memory_space<vmem>>, vector<8x72xbf16>
    %c0_30 = arith.constant 0 : index
    %c0_31 = arith.constant 0 : index
    %48 = vector.load %arg8[%c0_30, %c0_31] : memref<8x290xbf16, #tpu.memory_space<vmem>>, vector<8x256xbf16>
    %49 = vector.extract_strided_slice %2 {offsets = [0, 0], sizes = [1, 256], strides = [1, 1]} : vector<3x256xbf16> to vector<1x256xbf16>
    %50 = vector.broadcast %49 : vector<1x256xbf16> to vector<8x256xbf16>
    %51 = arith.mulf %48, %50 : vector<8x256xbf16>
    %c0_32 = arith.constant 0 : index
    %c1_33 = arith.constant 1 : index
    %52 = vector.load %arg8[%c0_32, %c1_33] : memref<8x290xbf16, #tpu.memory_space<vmem>>, vector<8x256xbf16>
    %c0_34 = arith.constant 0 : index
    %c2_35 = arith.constant 2 : index
    %53 = vector.load %arg8[%c0_34, %c2_35] : memref<8x290xbf16, #tpu.memory_space<vmem>>, vector<8x256xbf16>
    %54 = vector.extract_strided_slice %2 {offsets = [2, 0], sizes = [1, 256], strides = [1, 1]} : vector<3x256xbf16> to vector<1x256xbf16>
    %55 = vector.broadcast %54 : vector<1x256xbf16> to vector<8x256xbf16>
    %56 = arith.mulf %53, %55 : vector<8x256xbf16>
    %c0_36 = arith.constant 0 : index
    %c16_37 = arith.constant 16 : index
    %57 = vector.load %arg8[%c0_36, %c16_37] : memref<8x290xbf16, #tpu.memory_space<vmem>>, vector<8x256xbf16>
    %58 = vector.extract_strided_slice %2 {offsets = [0, 0], sizes = [1, 256], strides = [1, 1]} : vector<3x256xbf16> to vector<1x256xbf16>
    %59 = vector.broadcast %58 : vector<1x256xbf16> to vector<8x256xbf16>
    %60 = arith.mulf %57, %59 : vector<8x256xbf16>
    %c0_38 = arith.constant 0 : index
    %c17_39 = arith.constant 17 : index
    %61 = vector.load %arg8[%c0_38, %c17_39] : memref<8x290xbf16, #tpu.memory_space<vmem>>, vector<8x256xbf16>
    %c0_40 = arith.constant 0 : index
    %c18_41 = arith.constant 18 : index
    %62 = vector.load %arg8[%c0_40, %c18_41] : memref<8x290xbf16, #tpu.memory_space<vmem>>, vector<8x256xbf16>
    %63 = vector.extract_strided_slice %2 {offsets = [2, 0], sizes = [1, 256], strides = [1, 1]} : vector<3x256xbf16> to vector<1x256xbf16>
    %64 = vector.broadcast %63 : vector<1x256xbf16> to vector<8x256xbf16>
    %65 = arith.mulf %62, %64 : vector<8x256xbf16>
    %c0_42 = arith.constant 0 : index
    %c32_43 = arith.constant 32 : index
    %66 = vector.load %arg8[%c0_42, %c32_43] : memref<8x290xbf16, #tpu.memory_space<vmem>>, vector<8x256xbf16>
    %67 = vector.extract_strided_slice %2 {offsets = [0, 0], sizes = [1, 256], strides = [1, 1]} : vector<3x256xbf16> to vector<1x256xbf16>
    %68 = vector.broadcast %67 : vector<1x256xbf16> to vector<8x256xbf16>
    %69 = arith.mulf %66, %68 : vector<8x256xbf16>
    %c0_44 = arith.constant 0 : index
    %c33_45 = arith.constant 33 : index
    %70 = vector.load %arg8[%c0_44, %c33_45] : memref<8x290xbf16, #tpu.memory_space<vmem>>, vector<8x256xbf16>
    %c0_46 = arith.constant 0 : index
    %c34_47 = arith.constant 34 : index
    %71 = vector.load %arg8[%c0_46, %c34_47] : memref<8x290xbf16, #tpu.memory_space<vmem>>, vector<8x256xbf16>
    %72 = vector.extract_strided_slice %2 {offsets = [2, 0], sizes = [1, 256], strides = [1, 1]} : vector<3x256xbf16> to vector<1x256xbf16>
    %73 = vector.broadcast %72 : vector<1x256xbf16> to vector<8x256xbf16>
    %74 = arith.mulf %71, %73 : vector<8x256xbf16>
    %75 = tpu.concatenate %51, %52, %56, %60, %61, %65, %69, %70, %74 in 0 : vector<8x256xbf16>, vector<8x256xbf16>, vector<8x256xbf16>, vector<8x256xbf16>, vector<8x256xbf16>, vector<8x256xbf16>, vector<8x256xbf16>, vector<8x256xbf16>, vector<8x256xbf16> -> vector<72x256xbf16>
    %cst_48 = arith.constant dense<0.000000e+00> : vector<8x256xf32>
    %76 = tpu.matmul %47, %75, %cst_48 {dimension_numbers = #tpu.dot_dimension_numbers<[1], [0], [0], [1], [0, 0, 1, 1], [], []>} : vector<8x72xbf16>, vector<72x256xbf16>, vector<8x256xf32> -> vector<8x256xf32>
    %c0_49 = arith.constant 0 : index
    %c0_50 = arith.constant 0 : index
    %77 = vector.load %arg5[%c0_49, %c0_50] : memref<8x1xf32, #tpu.memory_space<vmem>>, vector<8x1xf32>
    %78 = vector.broadcast %77 : vector<8x1xf32> to vector<8x256xf32>
    %79 = arith.addf %76, %78 : vector<8x256xf32>
    %80 = arith.addf %79, %1 : vector<8x256xf32>
    %c0_51 = arith.constant 0 : index
    %c0_52 = arith.constant 0 : index
    %c0_53 = arith.constant 0 : index
    %81 = vector.load %arg7[%c0_51, %c0_52, %c0_53] : memref<1x8x256xf32, #tpu.memory_space<vmem>>, vector<1x8x256xf32>
    %82 = vector.shape_cast %81 : vector<1x8x256xf32> to vector<8x256xf32>
    %83 = vector.shape_cast %80 : vector<8x256xf32> to vector<1x8x256xf32>
    tpu.vector_store %arg7[%c0_51, %c0_52, %c0_53], %83 {strides = array<i32>} : memref<1x8x256xf32, #tpu.memory_space<vmem>>, vector<1x8x256xf32>,
    return
  }
  func.func @transform_0(%arg0: i32) -> (i32, i32, i32) {
    %c0_i32 = arith.constant 0 : i32
    %c0_i32_0 = arith.constant 0 : i32
    %c0_i32_1 = arith.constant 0 : i32
    return %arg0, %c0_i32, %c0_i32_0 : i32, i32, i32
  }
  func.func @transform_1(%arg0: i32) -> (i32, i32) {
    %c0_i32 = arith.constant 0 : i32
    %c0_i32_0 = arith.constant 0 : i32
    %c0_i32_1 = arith.constant 0 : i32
    return %c0_i32, %c0_i32_0 : i32, i32
  }
  func.func @transform_2(%arg0: i32) -> (i32, i32) {
    %c0_i32 = arith.constant 0 : i32
    %c0_i32_0 = arith.constant 0 : i32
    %c0_i32_1 = arith.constant 0 : i32
    return %c0_i32, %c0_i32_0 : i32, i32
  }
  func.func @transform_3(%arg0: i32) -> (i32, i32) {
    %c0_i32 = arith.constant 0 : i32
    %c0_i32_0 = arith.constant 0 : i32
    %c0_i32_1 = arith.constant 0 : i32
    return %c0_i32, %c0_i32_0 : i32, i32
  }
  func.func @transform_4(%arg0: i32) -> (i32, i32) {
    %c0_i32 = arith.constant 0 : i32
    %c0_i32_0 = arith.constant 0 : i32
    %c0_i32_1 = arith.constant 0 : i32
    return %c0_i32, %c0_i32_0 : i32, i32
  }
  func.func @transform_5(%arg0: i32) -> (i32, i32) {
    %c0_i32 = arith.constant 0 : i32
    %c0_i32_0 = arith.constant 0 : i32
    %c0_i32_1 = arith.constant 0 : i32
    return %c0_i32, %c0_i32_0 : i32, i32
  }
  func.func @transform_6(%arg0: i32) -> (i32, i32, i32) {
    %c0_i32 = arith.constant 0 : i32
    %c0_i32_0 = arith.constant 0 : i32
    %c0_i32_1 = arith.constant 0 : i32
    return %arg0, %c0_i32, %c0_i32_0 : i32, i32, i32
  }
}

</mosaic_0001>

<llo_original>
// kernel: a_call__.1
$region0: #{a_call__.1}
  #allocation0 [shape = 'u32[]', space=smem, size = 0x4, offset = 0x4, fixed_abs, tag = 'smem constant byte address 0x4 - core index']
  #allocation1 [shape = 'u32[72,128]{1,0:T(1,128)}', space=vmem, size = 0x9000, scoped, tag = 'internal scratch']
  #allocation2 [shape = 'bf16[8,290]{1,0:T(8,128)(2,1)}', space=vmem, size = 0x1800, scoped, tag = 'scratch operand']
  %s0 = inlined_call_operand.vmem [shape: f32[2,8,256], index: 0, kind: input, shape index: {}]
  %s1 = inlined_call_operand.vmem [shape: bf16[8,72], index: 1, kind: input, shape index: {}]
  %s2 = inlined_call_operand.vmem [shape: f32[8,1], index: 2, kind: input, shape index: {}]
  %s3 = inlined_call_operand.vmem [shape: bf16[8,72], index: 3, kind: input, shape index: {}]
  %s4 = inlined_call_operand.vmem [shape: f32[8,1], index: 4, kind: input, shape index: {}]
  %s5 = inlined_call_operand.vmem [shape: bf16[3,256], index: 5, kind: input, shape index: {}]
  %s6 = inlined_call_operand.vmem [shape: f32[2,8,256], index: 6, kind: output, shape index: {}]
  %s7 = sld [smem:[#allocation0]]
  $region57: #{a_call__.1} parent=0
    _
  %s9 = ssub.s32 1, %s7
  %s10 = scalar_select 0, %s9, %s7
  loop: start=0, step=1, limit=4
  $region2: #{a_call__.1} parent=0 // loop_pre_header
    _
  $region3: #{a_call__.1} parent=0 // loop_header
    %s12 = sphi 0, %s16
    %p13 = scmp.ge.s32.totalorder %s12, 4
    %s22 = sphi 0, %s24
    %s25 = sphi 0, %s22
    %s26 = sphi 0, %s25
    %s42 = sphi 0, %s26
    %s46 = sphi 0, %s46
    %s48 = sphi 0, %s46
    %s49 = sphi 0, %s48
    %s63 = sphi 0, %s49
    %s67 = sphi 0, %s67
    %s69 = sphi 0, %s67
    %s70 = sphi 0, %s69
    %s84 = sphi 0, %s70
    %s88 = sphi 0, %s88
    %s90 = sphi 0, %s88
    %s91 = sphi 0, %s90
    %s105 = sphi 0, %s91
    %s109 = sphi 0, %s109
    %s111 = sphi 0, %s109
    %s112 = sphi 0, %s111
    %s126 = sphi 0, %s112
    %s130 = sphi 0, %s130
    %s132 = sphi 0, %s130
    %s133 = sphi 0, %s132
    %s147 = sphi 0, %s133
    %s153 = sphi 0, %s155
    %s156 = sphi 0, %s153
    %s157 = sphi 0, %s156
    %s173 = sphi 0, %s157
  $region4: #{a_call__.1} parent=0 // loop_header_branch
    %15 = sbr.rel (%p13) target = $region8
  $region5: #{a_call__.1} parent=0 // loop_body
    %s17 = ssub.s32 %s12, 1
    %s18 = ssub.s32 %s12, 2
    %s19 = sadd.s32 %s12, 1
    %s20 = ssub.s32 %s12, %s19
    %p21 = scmp.eq.s32.totalorder %s20, 0
    %s23 = sadd.s32 %s22, 1
    %s24 = scalar_select %p21, %s22, %s23
    %p27 = pneg %p21
    %p28 = scmp.eq.s32.totalorder %s12, 1
    %p29 = por %p27, %p28
    %p30 = scmp.ne.s32.totalorder %s22, %s25
    %p31 = scmp.eq.s32.totalorder %s12, 0
    %p32 = por %p30, %p31
    %p33 = scmp.ne.s32.totalorder %s22, %s25
    %p34 = scmp.eq.s32.totalorder %s17, 1
    %p35 = por %p33, %p34
    %p36 = scmp.ne.s32.totalorder %s25, %s26
    %p37 = scmp.eq.s32.totalorder %s17, 0
    %p38 = por %p36, %p37
    %p39 = scmp.ne.s32.totalorder %s25, %s26
    %p40 = scmp.eq.s32.totalorder %s18, 1
    %p41 = por %p39, %p40
    %p43 = scmp.ne.s32.totalorder %s26, %s42
    %p44 = scmp.eq.s32.totalorder %s18, 0
    %p45 = por %p43, %p44
    %s47 = sadd.s32 %s46, 1
    %p50 = scmp.eq.s32.totalorder %s12, 1
    %p51 = scmp.ne.s32.totalorder %s46, %s48
    %p52 = scmp.eq.s32.totalorder %s12, 0
    %p53 = por %p51, %p52
    %p54 = scmp.ne.s32.totalorder %s46, %s48
    %p55 = scmp.eq.s32.totalorder %s17, 1
    %p56 = por %p54, %p55
    %p57 = scmp.ne.s32.totalorder %s48, %s49
    %p58 = scmp.eq.s32.totalorder %s17, 0
    %p59 = por %p57, %p58
    %p60 = scmp.ne.s32.totalorder %s48, %s49
    %p61 = scmp.eq.s32.totalorder %s18, 1
    %p62 = por %p60, %p61
    %p64 = scmp.ne.s32.totalorder %s49, %s63
    %p65 = scmp.eq.s32.totalorder %s18, 0
    %p66 = por %p64, %p65
    %s68 = sadd.s32 %s67, 1
    %p71 = scmp.eq.s32.totalorder %s12, 1
    %p72 = scmp.ne.s32.totalorder %s67, %s69
    %p73 = scmp.eq.s32.totalorder %s12, 0
    %p74 = por %p72, %p73
    %p75 = scmp.ne.s32.totalorder %s67, %s69
    %p76 = scmp.eq.s32.totalorder %s17, 1
    %p77 = por %p75, %p76
    %p78 = scmp.ne.s32.totalorder %s69, %s70
    %p79 = scmp.eq.s32.totalorder %s17, 0
    %p80 = por %p78, %p79
    %p81 = scmp.ne.s32.totalorder %s69, %s70
    %p82 = scmp.eq.s32.totalorder %s18, 1
    %p83 = por %p81, %p82
    %p85 = scmp.ne.s32.totalorder %s70, %s84
    %p86 = scmp.eq.s32.totalorder %s18, 0
    %p87 = por %p85, %p86
    %s89 = sadd.s32 %s88, 1
    %p92 = scmp.eq.s32.totalorder %s12, 1
    %p93 = scmp.ne.s32.totalorder %s88, %s90
    %p94 = scmp.eq.s32.totalorder %s12, 0
    %p95 = por %p93, %p94
    %p96 = scmp.ne.s32.totalorder %s88, %s90
    %p97 = scmp.eq.s32.totalorder %s17, 1
    %p98 = por %p96, %p97
    %p99 = scmp.ne.s32.totalorder %s90, %s91
    %p100 = scmp.eq.s32.totalorder %s17, 0
    %p101 = por %p99, %p100
    %p102 = scmp.ne.s32.totalorder %s90, %s91
    %p103 = scmp.eq.s32.totalorder %s18, 1
    %p104 = por %p102, %p103
    %p106 = scmp.ne.s32.totalorder %s91, %s105
    %p107 = scmp.eq.s32.totalorder %s18, 0
    %p108 = por %p106, %p107
    %s110 = sadd.s32 %s109, 1
    %p113 = scmp.eq.s32.totalorder %s12, 1
    %p114 = scmp.ne.s32.totalorder %s109, %s111
    %p115 = scmp.eq.s32.totalorder %s12, 0
    %p116 = por %p114, %p115
    %p117 = scmp.ne.s32.totalorder %s109, %s111
    %p118 = scmp.eq.s32.totalorder %s17, 1
    %p119 = por %p117, %p118
    %p120 = scmp.ne.s32.totalorder %s111, %s112
    %p121 = scmp.eq.s32.totalorder %s17, 0
    %p122 = por %p120, %p121
    %p123 = scmp.ne.s32.totalorder %s111, %s112
    %p124 = scmp.eq.s32.totalorder %s18, 1
    %p125 = por %p123, %p124
    %p127 = scmp.ne.s32.totalorder %s112, %s126
    %p128 = scmp.eq.s32.totalorder %s18, 0
    %p129 = por %p127, %p128
    %s131 = sadd.s32 %s130, 1
    %p134 = scmp.eq.s32.totalorder %s12, 1
    %p135 = scmp.ne.s32.totalorder %s130, %s132
    %p136 = scmp.eq.s32.totalorder %s12, 0
    %p137 = por %p135, %p136
    %p138 = scmp.ne.s32.totalorder %s130, %s132
    %p139 = scmp.eq.s32.totalorder %s17, 1
    %p140 = por %p138, %p139
    %p141 = scmp.ne.s32.totalorder %s132, %s133
    %p142 = scmp.eq.s32.totalorder %s17, 0
    %p143 = por %p141, %p142
    %p144 = scmp.ne.s32.totalorder %s132, %s133
    %p145 = scmp.eq.s32.totalorder %s18, 1
    %p146 = por %p144, %p145
    %p148 = scmp.ne.s32.totalorder %s133, %s147
    %p149 = scmp.eq.s32.totalorder %s18, 0
    %p150 = por %p148, %p149
    %s151 = ssub.s32 %s12, %s19
    %p152 = scmp.eq.s32.totalorder %s151, 0
    %s154 = sadd.s32 %s153, 1
    %s155 = scalar_select %p152, %s153, %s154
    %p158 = pneg %p152
    %p159 = scmp.eq.s32.totalorder %s12, 1
    %p160 = por %p158, %p159
    %p161 = scmp.ne.s32.totalorder %s153, %s156
    %p162 = scmp.eq.s32.totalorder %s12, 0
    %p163 = por %p161, %p162
    %p164 = scmp.ne.s32.totalorder %s153, %s156
    %p165 = scmp.eq.s32.totalorder %s17, 1
    %p166 = por %p164, %p165
    %p167 = scmp.ne.s32.totalorder %s156, %s157
    %p168 = scmp.eq.s32.totalorder %s17, 0
    %p169 = por %p167, %p168
    %p170 = scmp.ne.s32.totalorder %s156, %s157
    %p171 = scmp.eq.s32.totalorder %s18, 1
    %p172 = por %p170, %p171
    %p174 = scmp.ne.s32.totalorder %s157, %s173
    %p175 = scmp.eq.s32.totalorder %s18, 0
    %p176 = por %p174, %p175
    %p177 = scmp.le.s32.totalorder 1, %s12
    %p178 = scmp.lt.s32.totalorder %s12, 3
    %p179 = pnand %p177, %p178
    %p180 = pneg %p179
    // Predicated region
    $region9: #{a_call__.1} parent=5 // pred_check
      _
    $region10: #{a_call__.1} parent=5 // pred_check_branch
      %182 = sbr.rel (%p179) target = $region12
    $region11: #{a_call__.1} parent=5 // pred_region
      %s183 = ssub.s32 %s12, 1
      // Predicated region
      $region13: #{a_call__.1} parent=11 // pred_check
        %p184 = pneg %p59
      $region14: #{a_call__.1} parent=11 // pred_check_branch
        %186 = sbr.rel (%p184) target = $region16
      $region15: #{a_call__.1} parent=11 // pred_region
        _
      $region16: #{a_call__.1} parent=11 // pred_fallthru
        _
      // Predicated region
      $region17: #{a_call__.1} parent=11 // pred_check
        %p187 = pneg %p80
      $region18: #{a_call__.1} parent=11 // pred_check_branch
        %189 = sbr.rel (%p187) target = $region20
      $region19: #{a_call__.1} parent=11 // pred_region
        _
      $region20: #{a_call__.1} parent=11 // pred_fallthru
        _
      // Predicated region
      $region21: #{a_call__.1} parent=11 // pred_check
        %p190 = pneg %p101
      $region22: #{a_call__.1} parent=11 // pred_check_branch
        %192 = sbr.rel (%p190) target = $region24
      $region23: #{a_call__.1} parent=11 // pred_region
        _
      $region24: #{a_call__.1} parent=11 // pred_fallthru
        _
      // Predicated region
      $region25: #{a_call__.1} parent=11 // pred_check
        %p193 = pneg %p122
      $region26: #{a_call__.1} parent=11 // pred_check_branch
        %195 = sbr.rel (%p193) target = $region28
      $region27: #{a_call__.1} parent=11 // pred_region
        _
      $region28: #{a_call__.1} parent=11 // pred_fallthru
        _
      // Predicated region
      $region29: #{a_call__.1} parent=11 // pred_check
        %p196 = pneg %p143
      $region30: #{a_call__.1} parent=11 // pred_check_branch
        %198 = sbr.rel (%p196) target = $region32
      $region31: #{a_call__.1} parent=11 // pred_region
        _
      $region32: #{a_call__.1} parent=11 // pred_fallthru
        _
    $region12: #{a_call__.1} parent=5 // pred_fallthru
      _
    %p199 = scmp.lt.s32.totalorder %s12, 2
    // Predicated region
    $region33: #{a_call__.1} parent=5 // pred_check
      %p200 = pneg %p199
    $region34: #{a_call__.1} parent=5 // pred_check_branch
      %202 = sbr.rel (%p200) target = $region36
    $region35: #{a_call__.1} parent=5 // pred_region
      // Predicated region
      $region37: #{a_call__.1} parent=35 // pred_check
        %p203 = pneg %p32
      $region38: #{a_call__.1} parent=35 // pred_check_branch
        %205 = sbr.rel (%p203) target = $region40
      $region39: #{a_call__.1} parent=35 // pred_region
        %p206 = scmp.lt.s32.totalorder %s12, 1
        %s207 = scalar_select %p206, %s12, 1
        %s208 = smul.addr %s207, 2
        %s209 = smul.addr %s208, 8
        %s210 = scalar_lea.vmem %s0, %s209
      $region40: #{a_call__.1} parent=35 // pred_fallthru
        _
    $region36: #{a_call__.1} parent=5 // pred_fallthru
      _
    %p211 = scmp.le.s32.totalorder 1, %s12
    %p212 = scmp.lt.s32.totalorder %s12, 3
    %p213 = pnand %p211, %p212
    %p214 = pneg %p213
    // Predicated region
    $region41: #{a_call__.1} parent=5 // pred_check
      _
    $region42: #{a_call__.1} parent=5 // pred_check_branch
      %216 = sbr.rel (%p213) target = $region44
    $region43: #{a_call__.1} parent=5 // pred_region
      %s217 = ssub.s32 %s12, 1
      %p218 = scmp.lt.s32.totalorder %s17, 1
      %s219 = scalar_select %p218, %s17, 1
      %s220 = smul.addr %s219, 2
      %s221 = smul.addr %s220, 8
      %s222 = scalar_lea.vmem %s0, %s221
      %p223 = pneg %p38
      %p224 = pneg %p35
      %p225 = pneg %p59
      %p226 = pneg %p56
      %p227 = pneg %p80
      %p228 = pneg %p77
      %p229 = pneg %p101
      %p230 = pneg %p98
      %p231 = pneg %p122
      %p232 = pneg %p119
      %p233 = pneg %p143
      %p234 = pneg %p140
      %p235 = pneg %p169
      %p236 = pneg %p166
      %p237 = scmp.lt.s32.totalorder %s17, 1
      %s238 = scalar_select %p237, %s17, 1
      %s239 = smul.addr %s238, 2
      %s240 = smul.addr %s239, 8
      %s241 = scalar_lea.vmem %s6, %s240
      %p242 = scmp.lt.s32.totalorder %s17, 1
      %s243 = scalar_select %p242, %s17, 1
      %s244 = smul.addr %s243, 2
      %s245 = smul.addr %s244, 8
      %s246 = scalar_lea.vmem %s0, %s245
      %p247 = scmp.lt.s32.totalorder %s17, 1
      %s248 = scalar_select %p247, %s17, 1
      %s249 = smul.addr %s248, 2
      %s250 = smul.addr %s249, 8
      %s251 = scalar_lea.vmem %s6, %s250
      %v253 = vld [vmem:[%s246] sm:$0xff]
      %v254 = vld [vmem:[%s246 + $0x8] sm:$0xff]
      %v255 = vld [vmem:[%s5] sm:$0xf]
      %vm256 = vcmask 134144
      %257 = vst.msk [vmem:[#allocation2] sm:$0xf] %vm256, 0
      %vm258 = vcmask 273544
      %259 = vst.msk [vmem:[#allocation2 + $0x8] sm:$0xf] %vm258, 0
      %v260 = vmax.f32 %v253, 0.0
      %v261 = vmax.f32 %v254, 0.0
      %v262 = vpack.c.bf16 %v261, %v260
      %264 = vrot.lane.b32.xlu0 %v262, 17
      %v265 = vpop.permute.xlu0 %264
      %v266 = vrot.slane %v265, 4
      %vm267 = vcmask 138240
      %v268 = vsel %vm267, %v266, %v265
      %vm271 = vcmask 1043592
      %vm272 = vcmask 1047556
      %vm273 = vmor %vm272, %vm271
      %274 = vst.msk [vmem:[#allocation2] sm:$0xff] %vm273, %v268
      %275 = vst.msk [vmem:[#allocation2 + $0x8] sm:$0xf] %vm256, %v266
      %v276 = vld [vmem:[%s1] sm:$0xf]
      %v277 = vld [vmem:[#allocation2] sm:$0xff]
      %279 = vst [vmem:[#allocation1] ss:$4 sm:$0xff] %v255
      %v280 = vld.sshfl [vmem:[#allocation1] sm:$0xff pattern:$0x73625140]
      %v281 = vld.sshfl [vmem:[#allocation1 + $0x8] sm:$0xff pattern:$0x73625140]
      %v282 = vpack.i.b16 %v280, %v280
      %v284 = vperm.slane %v282, 0
      %v285 = vpack.i.b16 %v281, %v281
      %v287 = vperm.slane %v285, 0
      %v288 = vunpack.c.l.bf16 %v277
      %v289 = vunpack.c.h.bf16 %v277
      %v290 = vunpack.c.l.bf16 %v284
      %v291 = vunpack.c.l.bf16 %v287
      %v292 = vmul.f32 %v288, %v290
      %v293 = vmul.f32 %v289, %v291
      %v294 = vpack.c.bf16 %v293, %v292
      %v295 = vld [vmem:[#allocation2] sm:$0xff]
      %v296 = vld [vmem:[#allocation2 + $0x8] sm:$0xf]
      %297 = vst [vmem:[#allocation1] ss:$4 sm:$0xff] %v255
      %v298 = vld.sshfl [vmem:[#allocation1] sm:$0xff pattern:$0x73625140]
      %v299 = vld.sshfl [vmem:[#allocation1 + $0x8] sm:$0xff pattern:$0x73625140]
      %v300 = vpack.i.b16 %v298, %v298
      %v302 = vperm.slane %v300, 1
      %v303 = vpack.i.b16 %v299, %v299
      %v305 = vperm.slane %v303, 1
      %v306 = vunpack.c.l.bf16 %v295
      %v307 = vunpack.c.h.bf16 %v295
      %v308 = vunpack.c.l.bf16 %v296
      %v309 = vunpack.c.l.bf16 %v302
      %v310 = vunpack.c.l.bf16 %v305
      %313 = vrot.lane.b32.xlu0 %v309, 2
      %v314 = vpop.permute.xlu0 %313
      %315 = vrot.lane.b32.xlu0 %v310, 2
      %v316 = vpop.permute.xlu0 %315
      %vm317 = vcmask 15360
      %v318 = vsel %vm317, %v314, %v316
      %v322 = vmul.f32 %v306, %v314
      %v323 = vmul.f32 %v307, %v318
      %v324 = vmul.f32 %v308, %v316
      %v325 = vpack.c.bf16 %v323, %v322
      %v326 = vpack.c.bf16 %v324, %v324
      %v327 = vld [vmem:[#allocation2] sm:$0xff]
      %v328 = vld [vmem:[#allocation2 + $0x8] sm:$0xf]
      %v329 = vunpack.c.l.bf16 %v327
      %v330 = vunpack.c.h.bf16 %v327
      %v331 = vunpack.c.l.bf16 %v328
      %334 = vrot.lane.b32.xlu0 %v290, 16
      %v335 = vpop.permute.xlu0 %334
      %336 = vrot.lane.b32.xlu0 %v291, 16
      %v337 = vpop.permute.xlu0 %336
      %vm338 = vcmask 130048
      %v339 = vsel %vm338, %v335, %v337
      %v343 = vmul.f32 %v329, %v335
      %v344 = vmul.f32 %v330, %v339
      %v345 = vmul.f32 %v331, %v337
      %v346 = vpack.c.bf16 %v344, %v343
      %v347 = vpack.c.bf16 %v345, %v345
      %348 = vrot.lane.b32.xlu0 %v309, 18
      %v349 = vpop.permute.xlu0 %348
      %350 = vrot.lane.b32.xlu0 %v310, 18
      %v351 = vpop.permute.xlu0 %350
      %vm352 = vcmask 146432
      %v353 = vsel %vm352, %v349, %v351
      %v357 = vmul.f32 %v329, %v349
      %v358 = vmul.f32 %v330, %v353
      %v359 = vmul.f32 %v331, %v351
      %v360 = vpack.c.bf16 %v358, %v357
      %v361 = vpack.c.bf16 %v359, %v359
      %362 = vrot.lane.b32.xlu0 %v290, 32
      %v363 = vpop.permute.xlu0 %362
      %364 = vrot.lane.b32.xlu0 %v291, 32
      %v365 = vpop.permute.xlu0 %364
      %vm366 = vcmask 261120
      %v367 = vsel %vm366, %v363, %v365
      %v371 = vmul.f32 %v329, %v363
      %v372 = vmul.f32 %v330, %v367
      %v373 = vmul.f32 %v331, %v365
      %v374 = vpack.c.bf16 %v372, %v371
      %v375 = vpack.c.bf16 %v373, %v373
      %376 = vrot.lane.b32.xlu0 %v309, 34
      %v377 = vpop.permute.xlu0 %376
      %378 = vrot.lane.b32.xlu0 %v310, 34
      %v379 = vpop.permute.xlu0 %378
      %vm380 = vcmask 277504
      %v381 = vsel %vm380, %v377, %v379
      %v385 = vmul.f32 %v329, %v377
      %v386 = vmul.f32 %v330, %v381
      %v387 = vmul.f32 %v331, %v379
      %v388 = vpack.c.bf16 %v386, %v385
      %v389 = vpack.c.bf16 %v387, %v387
      %v391 = vunpack.c.l.b16 %v294
      %v392 = vunpack.c.h.b16 %v294
      %v393 = vpack.c.b16 %v391, %v391
      %v394 = vpack.c.b16 %v392, %v392
      %v397 = vunpack.c.l.b16 %v295
      %v398 = vunpack.c.h.b16 %v295
      %v399 = vunpack.c.l.b16 %v296
      %v400 = vpack.c.b16 %v397, %v397
      %v401 = vpack.c.b16 %v398, %v398
      %v402 = vpack.c.b16 %v399, %v399
      %403 = vrot.lane.b32.xlu0 %v400, 127
      %v404 = vpop.permute.xlu0 %403
      %405 = vrot.lane.b32.xlu0 %v401, 127
      %v406 = vpop.permute.xlu0 %405
      %407 = vrot.lane.b32.xlu0 %v402, 127
      %v408 = vpop.permute.xlu0 %407
      %vm409 = vcmask 1039360
      %v410 = vsel %vm409, %v404, %v406
      %v411 = vsel %vm409, %v406, %v408
      %v414 = vunpack.c.l.b16 %v325
      %v415 = vunpack.c.h.b16 %v325
      %v416 = vunpack.c.l.b16 %v326
      %v417 = vpack.c.b16 %v414, %v414
      %v418 = vpack.c.b16 %v415, %v415
      %v419 = vpack.c.b16 %v416, %v416
      %420 = vrot.lane.b32.xlu0 %v417, 126
      %v421 = vpop.permute.xlu0 %420
      %422 = vrot.lane.b32.xlu0 %v418, 126
      %v423 = vpop.permute.xlu0 %422
      %424 = vrot.lane.b32.xlu0 %v419, 126
      %v425 = vpop.permute.xlu0 %424
      %vm426 = vcmask 1031168
      %v427 = vsel %vm426, %v421, %v423
      %v428 = vsel %vm426, %v423, %v425
      %v431 = vunpack.c.l.b16 %v346
      %v432 = vunpack.c.h.b16 %v346
      %v433 = vunpack.c.l.b16 %v347
      %v434 = vpack.c.b16 %v431, %v431
      %v435 = vpack.c.b16 %v432, %v432
      %v436 = vpack.c.b16 %v433, %v433
      %437 = vrot.lane.b32.xlu0 %v434, 112
      %v438 = vpop.permute.xlu0 %437
      %439 = vrot.lane.b32.xlu0 %v435, 112
      %v440 = vpop.permute.xlu0 %439
      %441 = vrot.lane.b32.xlu0 %v436, 112
      %v442 = vpop.permute.xlu0 %441
      %vm443 = vcmask 916480
      %v444 = vsel %vm443, %v438, %v440
      %v445 = vsel %vm443, %v440, %v442
      %v448 = vunpack.c.l.b16 %v327
      %v449 = vunpack.c.h.b16 %v327
      %v450 = vunpack.c.l.b16 %v328
      %v451 = vpack.c.b16 %v448, %v448
      %v452 = vpack.c.b16 %v449, %v449
      %v453 = vpack.c.b16 %v450, %v450
      %454 = vrot.lane.b32.xlu0 %v451, 111
      %v455 = vpop.permute.xlu0 %454
      %456 = vrot.lane.b32.xlu0 %v452, 111
      %v457 = vpop.permute.xlu0 %456
      %458 = vrot.lane.b32.xlu0 %v453, 111
      %v459 = vpop.permute.xlu0 %458
      %vm460 = vcmask 908288
      %v461 = vsel %vm460, %v455, %v457
      %v462 = vsel %vm460, %v457, %v459
      %v465 = vunpack.c.l.b16 %v360
      %v466 = vunpack.c.h.b16 %v360
      %v467 = vunpack.c.l.b16 %v361
      %v468 = vpack.c.b16 %v465, %v465
      %v469 = vpack.c.b16 %v466, %v466
      %v470 = vpack.c.b16 %v467, %v467
      %471 = vrot.lane.b32.xlu0 %v468, 110
      %v472 = vpop.permute.xlu0 %471
      %473 = vrot.lane.b32.xlu0 %v469, 110
      %v474 = vpop.permute.xlu0 %473
      %475 = vrot.lane.b32.xlu0 %v470, 110
      %v476 = vpop.permute.xlu0 %475
      %vm477 = vcmask 900096
      %v478 = vsel %vm477, %v472, %v474
      %v479 = vsel %vm477, %v474, %v476
      %v482 = vunpack.c.l.b16 %v374
      %v483 = vunpack.c.h.b16 %v374
      %v484 = vunpack.c.l.b16 %v375
      %v485 = vpack.c.b16 %v482, %v482
      %v486 = vpack.c.b16 %v483, %v483
      %v487 = vpack.c.b16 %v484, %v484
      %488 = vrot.lane.b32.xlu0 %v485, 96
      %v489 = vpop.permute.xlu0 %488
      %490 = vrot.lane.b32.xlu0 %v486, 96
      %v491 = vpop.permute.xlu0 %490
      %492 = vrot.lane.b32.xlu0 %v487, 96
      %v493 = vpop.permute.xlu0 %492
      %vm494 = vcmask 785408
      %v495 = vsel %vm494, %v489, %v491
      %v496 = vsel %vm494, %v491, %v493
      %497 = vrot.lane.b32.xlu0 %v451, 95
      %v498 = vpop.permute.xlu0 %497
      %499 = vrot.lane.b32.xlu0 %v452, 95
      %v500 = vpop.permute.xlu0 %499
      %501 = vrot.lane.b32.xlu0 %v453, 95
      %v502 = vpop.permute.xlu0 %501
      %vm503 = vcmask 777216
      %v504 = vsel %vm503, %v498, %v500
      %v505 = vsel %vm503, %v500, %v502
      %v508 = vunpack.c.l.b16 %v388
      %v509 = vunpack.c.h.b16 %v388
      %v510 = vunpack.c.l.b16 %v389
      %v511 = vpack.c.b16 %v508, %v508
      %v512 = vpack.c.b16 %v509, %v509
      %v513 = vpack.c.b16 %v510, %v510
      %514 = vrot.lane.b32.xlu0 %v511, 94
      %v515 = vpop.permute.xlu0 %514
      %516 = vrot.lane.b32.xlu0 %v512, 94
      %v517 = vpop.permute.xlu0 %516
      %518 = vrot.lane.b32.xlu0 %v513, 94
      %v519 = vpop.permute.xlu0 %518
      %vm520 = vcmask 769024
      %v521 = vsel %vm520, %v515, %v517
      %v522 = vsel %vm520, %v517, %v519
      %vm523 = vcmask 1043456
      %v526 = vsel %vm523, %v393, %v410
      %v530 = vsel %vm523, %v394, %v411
      %v534 = vsel %vm523, %v427, %v444
      %v538 = vsel %vm523, %v428, %v445
      %v542 = vsel %vm523, %v461, %v478
      %v546 = vsel %vm523, %v462, %v479
      %v550 = vsel %vm523, %v495, %v504
      %v554 = vsel %vm523, %v496, %v505
      %v556 = vld [vmem:[%s2] sm:$0xff]
      %558 = vset.pattern.permute.xlu0 0
      %559 = vperm.xlu0 %558, %v556
      %v560 = vpop.permute.xlu0 %559
      %vm562 = vcmask 588800
      %v564 = vsel %vm562, %v276, 0
      %v567 = vsel %vm523, %v521, 0
      %v570 = vsel %vm523, %v522, 0
      %572 = vmatpush.bf16.msra.mxu0 0
      %573 = vmatpush.bf16.msra.mxu0 0
      %574 = vmatpush.bf16.msra.mxu0 0
      %575 = vmatpush.bf16.msra.mxu0 %v567
      %576 = vmatpush.bf16.msra.mxu0 %v550
      %577 = vmatpush.bf16.msra.mxu0 %v542
      %578 = vmatpush.bf16.msra.mxu0 %v534
      %579 = vmatpush.bf16.msra.mxu0 %v526
      %580 = vmatmul.bf16.gmra.mxu0 %v564
      %v581 = vpop.f32.mrf.mxu0
      %v582 = vadd.f32 %v560, %v581
      %v583 = vpop.f32.mrf.mxu0
      %584 = vdwg.mxu0
      %585 = vmatpush.bf16.msra.mxu0 0
      %586 = vmatpush.bf16.msra.mxu0 0
      %587 = vmatpush.bf16.msra.mxu0 0
      %588 = vmatpush.bf16.msra.mxu0 %v570
      %589 = vmatpush.bf16.msra.mxu0 %v554
      %590 = vmatpush.bf16.msra.mxu0 %v546
      %591 = vmatpush.bf16.msra.mxu0 %v538
      %592 = vmatpush.bf16.msra.mxu0 %v530
      %593 = vmatmul.bf16.gmra.mxu0 %v564
      %v594 = vpop.f32.mrf.mxu0
      %v595 = vadd.f32 %v560, %v594
      %v596 = vpop.f32.mrf.mxu0
      %597 = vdwg.mxu0
      %v598 = vmax.f32 %v582, 0.0
      %v599 = vmax.f32 %v595, 0.0
      %v600 = vpack.c.bf16 %v599, %v598
      %602 = vrot.lane.b32.xlu0 %v600, 17
      %v603 = vpop.permute.xlu0 %602
      %v604 = vrot.slane %v603, 4
      %v605 = vsel %vm267, %v604, %v603
      %608 = vst.msk [vmem:[#allocation2] sm:$0xff] %vm273, %v605
      %609 = vst.msk [vmem:[#allocation2 + $0x8] sm:$0xf] %vm256, %v604
      %v610 = vld [vmem:[%s3] sm:$0xf]
      %v611 = vld [vmem:[#allocation2] sm:$0xff]
      %v612 = vunpack.c.l.bf16 %v611
      %v613 = vunpack.c.h.bf16 %v611
      %v614 = vmul.f32 %v612, %v290
      %v615 = vmul.f32 %v613, %v291
      %v616 = vpack.c.bf16 %v615, %v614
      %v617 = vld [vmem:[#allocation2 + $0x8] sm:$0xf]
      %v618 = vunpack.c.l.bf16 %v617
      %v619 = vmul.f32 %v612, %v314
      %v620 = vmul.f32 %v613, %v318
      %v621 = vmul.f32 %v618, %v316
      %v622 = vpack.c.bf16 %v620, %v619
      %v623 = vpack.c.bf16 %v621, %v621
      %v624 = vmul.f32 %v612, %v335
      %v625 = vmul.f32 %v613, %v339
      %v626 = vmul.f32 %v618, %v337
      %v627 = vpack.c.bf16 %v625, %v624
      %v628 = vpack.c.bf16 %v626, %v626
      %v629 = vmul.f32 %v612, %v349
      %v630 = vmul.f32 %v613, %v353
      %v631 = vmul.f32 %v618, %v351
      %v632 = vpack.c.bf16 %v630, %v629
      %v633 = vpack.c.bf16 %v631, %v631
      %v634 = vmul.f32 %v612, %v363
      %v635 = vmul.f32 %v613, %v367
      %v636 = vmul.f32 %v618, %v365
      %v637 = vpack.c.bf16 %v635, %v634
      %v638 = vpack.c.bf16 %v636, %v636
      %v639 = vmul.f32 %v612, %v377
      %v640 = vmul.f32 %v613, %v381
      %v641 = vmul.f32 %v618, %v379
      %v642 = vpack.c.bf16 %v640, %v639
      %v643 = vpack.c.bf16 %v641, %v641
      %v645 = vunpack.c.l.b16 %v616
      %v646 = vunpack.c.h.b16 %v616
      %v647 = vpack.c.b16 %v645, %v645
      %v648 = vpack.c.b16 %v646, %v646
      %v651 = vunpack.c.l.b16 %v611
      %v652 = vunpack.c.h.b16 %v611
      %v653 = vunpack.c.l.b16 %v617
      %v654 = vpack.c.b16 %v651, %v651
      %v655 = vpack.c.b16 %v652, %v652
      %v656 = vpack.c.b16 %v653, %v653
      %657 = vrot.lane.b32.xlu0 %v654, 127
      %v658 = vpop.permute.xlu0 %657
      %659 = vrot.lane.b32.xlu0 %v655, 127
      %v660 = vpop.permute.xlu0 %659
      %661 = vrot.lane.b32.xlu0 %v656, 127
      %v662 = vpop.permute.xlu0 %661
      %v663 = vsel %vm409, %v658, %v660
      %v664 = vsel %vm409, %v660, %v662
      %v667 = vunpack.c.l.b16 %v622
      %v668 = vunpack.c.h.b16 %v622
      %v669 = vunpack.c.l.b16 %v623
      %v670 = vpack.c.b16 %v667, %v667
      %v671 = vpack.c.b16 %v668, %v668
      %v672 = vpack.c.b16 %v669, %v669
      %673 = vrot.lane.b32.xlu0 %v670, 126
      %v674 = vpop.permute.xlu0 %673
      %675 = vrot.lane.b32.xlu0 %v671, 126
      %v676 = vpop.permute.xlu0 %675
      %677 = vrot.lane.b32.xlu0 %v672, 126
      %v678 = vpop.permute.xlu0 %677
      %v679 = vsel %vm426, %v674, %v676
      %v680 = vsel %vm426, %v676, %v678
      %v683 = vunpack.c.l.b16 %v627
      %v684 = vunpack.c.h.b16 %v627
      %v685 = vunpack.c.l.b16 %v628
      %v686 = vpack.c.b16 %v683, %v683
      %v687 = vpack.c.b16 %v684, %v684
      %v688 = vpack.c.b16 %v685, %v685
      %689 = vrot.lane.b32.xlu0 %v686, 112
      %v690 = vpop.permute.xlu0 %689
      %691 = vrot.lane.b32.xlu0 %v687, 112
      %v692 = vpop.permute.xlu0 %691
      %693 = vrot.lane.b32.xlu0 %v688, 112
      %v694 = vpop.permute.xlu0 %693
      %v695 = vsel %vm443, %v690, %v692
      %v696 = vsel %vm443, %v692, %v694
      %697 = vrot.lane.b32.xlu0 %v654, 111
      %v698 = vpop.permute.xlu0 %697
      %699 = vrot.lane.b32.xlu0 %v655, 111
      %v700 = vpop.permute.xlu0 %699
      %701 = vrot.lane.b32.xlu0 %v656, 111
      %v702 = vpop.permute.xlu0 %701
      %v703 = vsel %vm460, %v698, %v700
      %v704 = vsel %vm460, %v700, %v702
      %v707 = vunpack.c.l.b16 %v632
      %v708 = vunpack.c.h.b16 %v632
      %v709 = vunpack.c.l.b16 %v633
      %v710 = vpack.c.b16 %v707, %v707
      %v711 = vpack.c.b16 %v708, %v708
      %v712 = vpack.c.b16 %v709, %v709
      %713 = vrot.lane.b32.xlu0 %v710, 110
      %v714 = vpop.permute.xlu0 %713
      %715 = vrot.lane.b32.xlu0 %v711, 110
      %v716 = vpop.permute.xlu0 %715
      %717 = vrot.lane.b32.xlu0 %v712, 110
      %v718 = vpop.permute.xlu0 %717
      %v719 = vsel %vm477, %v714, %v716
      %v720 = vsel %vm477, %v716, %v718
      %v723 = vunpack.c.l.b16 %v637
      %v724 = vunpack.c.h.b16 %v637
      %v725 = vunpack.c.l.b16 %v638
      %v726 = vpack.c.b16 %v723, %v723
      %v727 = vpack.c.b16 %v724, %v724
      %v728 = vpack.c.b16 %v725, %v725
      %729 = vrot.lane.b32.xlu0 %v726, 96
      %v730 = vpop.permute.xlu0 %729
      %731 = vrot.lane.b32.xlu0 %v727, 96
      %v732 = vpop.permute.xlu0 %731
      %733 = vrot.lane.b32.xlu0 %v728, 96
      %v734 = vpop.permute.xlu0 %733
      %v735 = vsel %vm494, %v730, %v732
      %v736 = vsel %vm494, %v732, %v734
      %737 = vrot.lane.b32.xlu0 %v654, 95
      %v738 = vpop.permute.xlu0 %737
      %739 = vrot.lane.b32.xlu0 %v655, 95
      %v740 = vpop.permute.xlu0 %739
      %741 = vrot.lane.b32.xlu0 %v656, 95
      %v742 = vpop.permute.xlu0 %741
      %v743 = vsel %vm503, %v738, %v740
      %v744 = vsel %vm503, %v740, %v742
      %v747 = vunpack.c.l.b16 %v642
      %v748 = vunpack.c.h.b16 %v642
      %v749 = vunpack.c.l.b16 %v643
      %v750 = vpack.c.b16 %v747, %v747
      %v751 = vpack.c.b16 %v748, %v748
      %v752 = vpack.c.b16 %v749, %v749
      %753 = vrot.lane.b32.xlu0 %v750, 94
      %v754 = vpop.permute.xlu0 %753
      %755 = vrot.lane.b32.xlu0 %v751, 94
      %v756 = vpop.permute.xlu0 %755
      %757 = vrot.lane.b32.xlu0 %v752, 94
      %v758 = vpop.permute.xlu0 %757
      %v759 = vsel %vm520, %v754, %v756
      %v760 = vsel %vm520, %v756, %v758
      %v763 = vsel %vm523, %v647, %v663
      %v767 = vsel %vm523, %v648, %v664
      %v771 = vsel %vm523, %v679, %v695
      %v775 = vsel %vm523, %v680, %v696
      %v779 = vsel %vm523, %v703, %v719
      %v783 = vsel %vm523, %v704, %v720
      %v787 = vsel %vm523, %v735, %v743
      %v791 = vsel %vm523, %v736, %v744
      %v793 = vld [vmem:[%s4] sm:$0xff]
      %795 = vset.pattern.permute.xlu0 0
      %796 = vperm.xlu0 %795, %v793
      %v797 = vpop.permute.xlu0 %796
      %v800 = vsel %vm562, %v610, 0
      %v803 = vsel %vm523, %v759, 0
      %v806 = vsel %vm523, %v760, 0
      %808 = vmatpush.bf16.msra.mxu0 0
      %809 = vmatpush.bf16.msra.mxu0 0
      %810 = vmatpush.bf16.msra.mxu0 0
      %811 = vmatpush.bf16.msra.mxu0 %v803
      %812 = vmatpush.bf16.msra.mxu0 %v787
      %813 = vmatpush.bf16.msra.mxu0 %v779
      %814 = vmatpush.bf16.msra.mxu0 %v771
      %815 = vmatpush.bf16.msra.mxu0 %v763
      %816 = vmatmul.bf16.gmra.mxu0 %v800
      %v817 = vpop.f32.mrf.mxu0
      %v818 = vadd.f32 %v797, %v817
      %v819 = vpop.f32.mrf.mxu0
      %820 = vdwg.mxu0
      %821 = vmatpush.bf16.msra.mxu0 0
      %822 = vmatpush.bf16.msra.mxu0 0
      %823 = vmatpush.bf16.msra.mxu0 0
      %824 = vmatpush.bf16.msra.mxu0 %v806
      %825 = vmatpush.bf16.msra.mxu0 %v791
      %826 = vmatpush.bf16.msra.mxu0 %v783
      %827 = vmatpush.bf16.msra.mxu0 %v775
      %828 = vmatpush.bf16.msra.mxu0 %v767
      %829 = vmatmul.bf16.gmra.mxu0 %v800
      %v830 = vpop.f32.mrf.mxu0
      %v831 = vadd.f32 %v797, %v830
      %v832 = vpop.f32.mrf.mxu0
      %833 = vdwg.mxu0
      %v834 = vadd.f32 %v818, %v253
      %v835 = vadd.f32 %v831, %v254
      %836 = vst [vmem:[%s251] sm:$0xff] %v834
      %837 = vst [vmem:[%s251 + $0x8] sm:$0xff] %v835
      %p838 = scmp.lt.s32.totalorder %s17, 1
      %s839 = scalar_select %p838, %s17, 1
      %s840 = smul.addr %s839, 2
      %s841 = smul.addr %s840, 8
      %s842 = scalar_lea.vmem %s6, %s841
      // Predicated region
      $region45: #{a_call__.1} parent=43 // pred_check
        %p843 = pneg %p166
      $region46: #{a_call__.1} parent=43 // pred_check_branch
        %845 = sbr.rel (%p843) target = $region48
      $region47: #{a_call__.1} parent=43 // pred_region
        _
      $region48: #{a_call__.1} parent=43 // pred_fallthru
        _
    $region44: #{a_call__.1} parent=5 // pred_fallthru
      _
    %p846 = scmp.le.s32.totalorder 2, %s12
    // Predicated region
    $region49: #{a_call__.1} parent=5 // pred_check
      %p847 = pneg %p846
    $region50: #{a_call__.1} parent=5 // pred_check_branch
      %849 = sbr.rel (%p847) target = $region52
    $region51: #{a_call__.1} parent=5 // pred_region
      %s850 = ssub.s32 %s12, 2
      // Predicated region
      $region53: #{a_call__.1} parent=51 // pred_check
        %p851 = pneg %p172
      $region54: #{a_call__.1} parent=51 // pred_check_branch
        %853 = sbr.rel (%p851) target = $region56
      $region55: #{a_call__.1} parent=51 // pred_region
        %p854 = scmp.lt.s32.totalorder %s18, 1
        %s855 = scalar_select %p854, %s18, 1
        %s856 = smul.addr %s855, 2
        %s857 = smul.addr %s856, 8
        %s858 = scalar_lea.vmem %s6, %s857
      $region56: #{a_call__.1} parent=51 // pred_fallthru
        _
    $region52: #{a_call__.1} parent=5 // pred_fallthru
      _
  $region6: #{a_call__.1} parent=0 // loop_footer
    %s16 = sadd.s32 1, %s12
  $region7: #{a_call__.1} parent=0 // loop_footer_branch
    %11 = sbr.rel target = $region3
  $region8: #{a_call__.1} parent=0 // loop_exit
    _

</llo_original>
